<compile_context>
chip_gen: v7x
topology: tpu7x:2x2x1
jax: 0.10.0
libtpu: 0.0.40
codegen_flags: <defaults>
</compile_context>

<pallas_src>
import functools

import jax
import jax.numpy as jnp
import numpy as np
from jax.experimental import pallas as pl
from jax.experimental.pallas import tpu as pltpu


def _fused_kernel(snow_ref, mask_ref, bmask_ref, out_ref, *, w, hw,
                  max_iters, check_every):
    """Full partial_avg do-while loop for one block of flattened planes.

    snow_ref/mask_ref/out_ref are (bt, H*W) float32; each row is one image
    plane flattened row-major (lane axis = H*W). A vertical +-1 shift is a
    lane rotate by +-w, a horizontal +-1 shift a rotate by +-1, with the
    boundary-validity table zeroing taps that wrapped around a row/plane edge.
    """
    snow0 = snow_ref[...]
    mask0 = mask_ref[...]
    shape = snow0.shape

    # (4, HW) validity rows -> materialize full-size masks ONCE (hoisted).
    bm = bmask_ref[...]
    m_up = jnp.broadcast_to(bm[0:1, :], shape)      # tap x[j-w] in bounds
    m_down = jnp.broadcast_to(bm[1:2, :], shape)    # tap x[j+w] in bounds
    m_left = jnp.broadcast_to(bm[2:3, :], shape)    # tap x[j-1] in bounds
    m_right = jnp.broadcast_to(bm[3:4, :], shape)   # tap x[j+1] in bounds
    b_up = m_up != 0.0
    b_down = m_down != 0.0
    b_left = m_left != 0.0
    b_right = m_right != 0.0

    neg_inf = jnp.float32(-jnp.inf)
    # Positive rotate amounts only (roll by -s == roll by hw - s).
    sh_down, sh_up = hw - w, w
    sh_right, sh_left = hw - 1, 1

    def nbr_sum(x):
        # Separable 3x3 sum with zero padding: vertical pass, then horizontal.
        v = (x
             + pltpu.roll(x, sh_down, axis=1) * m_down
             + pltpu.roll(x, sh_up, axis=1) * m_up)
        return (v
                + pltpu.roll(v, sh_right, axis=1) * m_right
                + pltpu.roll(v, sh_left, axis=1) * m_left)

    def nbr_max(x):
        # Separable 3x3 max with -inf padding; center tap keeps it finite.
        v = jnp.maximum(
            x,
            jnp.maximum(
                jnp.where(b_down, pltpu.roll(x, sh_down, axis=1), neg_inf),
                jnp.where(b_up, pltpu.roll(x, sh_up, axis=1), neg_inf)))
        return jnp.maximum(
            v,
            jnp.maximum(
                jnp.where(b_right, pltpu.roll(v, sh_right, axis=1), neg_inf),
                jnp.where(b_left, pltpu.roll(v, sh_left, axis=1), neg_inf)))

    def step(snow, mask, pre_mask):
        """One conv()+update iteration. pre_mask is the already-binarized mask
        (== mask itself from iteration 2 onward). Returns new state and the
        convergence scalar min(conv_m) (== 0 iff holes remain)."""
        max_get = nbr_max(snow)                        # MaxPool2d(snow)
        conv_sm = nbr_sum(snow * mask)                 # snow_conv(snow*mask)
        conv_m = nbr_sum(mask)                         # mask_conv(mask)
        holes = conv_m == 0.0                          # update_holes
        mask_sum = jnp.where(holes, 1.0, conv_m)
        inv = pl.reciprocal(mask_sum, approx=True)     # EUP vrcp
        inv = inv * (2.0 - mask_sum * inv)             # one NR step -> ~exact
        out = jnp.where(holes, 0.0, conv_sm * inv)
        new_mask = jnp.where(holes, 0.0, 1.0)
        # (1 - pre_mask) * new_mask == new_mask - pre_mask for the module's
        # non-negative masks (pre_mask = 1 implies new_mask = 1).
        snow_new = (snow * pre_mask
                    + (0.6 * max_get + 0.4 * out) * (new_mask - pre_mask))
        return snow_new, new_mask, jnp.min(conv_m)

    # do-while: body always runs at least once. The first iteration must use
    # the RAW mask for the division denominator (exact PyTorch semantics) and
    # a binarized pre_mask; afterwards the carried mask is exactly 0/1.
    pre0 = jnp.where(mask0 == 0.0, 0.0, 1.0)
    s1, m1, metric1 = step(snow0, mask0, pre0)
    state0 = (s1, m1, metric1, jnp.int32(1))

    def cond(st):
        # holes remain AND iteration cap not hit (cap only guards the
        # pathological all-zero-mask input that would never terminate).
        return jnp.logical_and(st[2] == 0.0, st[3] < max_iters)

    def body(st):
        snow, mask, metric, it = st
        # K unrolled steps per convergence check; a converged plane is an
        # exact fixed point, so any overshoot steps are no-ops.
        for _ in range(check_every):
            snow, mask, metric = step(snow, mask, mask)
        return snow, mask, metric, it + check_every

    snow_final, _, _, _ = jax.lax.while_loop(cond, body, state0)
    out_ref[...] = snow_final


@jax.jit
def partial_avg_forward(snow_nchw, mask_nchw):
    """Equivalent of partial_avg().forward(snow, mask). Inputs NCHW float."""
    N, C, H, W = snow_nchw.shape
    B, HW = N * C, H * W

    # Megacore split only if each block keeps >= 8 rows (full sublane tiles);
    # otherwise one block (better vreg fill, single global convergence loop).
    n_blk = 2 if (B % 2 == 0 and B // 2 >= 8) else 1
    bt = B // n_blk

    # Lane-dense layout: one flattened plane per row (last dim = H*W).
    snow = snow_nchw.astype(jnp.float32).reshape(n_blk, bt, HW)
    mask = mask_nchw.astype(jnp.float32).reshape(n_blk, bt, HW)

    # Tiny (4, HW) boundary-validity table, broadcast in-kernel. Rows:
    # up / down / left / right tap in bounds for the flattened stencil.
    j = np.arange(HW, dtype=np.int64)
    col = j % W
    bmask = jnp.asarray(
        np.stack([j >= W, j < HW - W, col > 0, col < W - 1]).astype(np.float32))

    plane_spec = pl.BlockSpec((None, bt, HW), lambda i: (i, 0, 0))
    bmask_spec = pl.BlockSpec((4, HW), lambda i: (0, 0))

    kernel = functools.partial(_fused_kernel, w=W, hw=HW,
                               max_iters=H + W + 8, check_every=2)

    snow_out = pl.pallas_call(
        kernel,
        out_shape=jax.ShapeDtypeStruct((n_blk, bt, HW), jnp.float32),
        grid=(n_blk,),
        in_specs=[plane_spec, plane_spec, bmask_spec],
        out_specs=plane_spec,
        compiler_params=pltpu.CompilerParams(
            dimension_semantics=("parallel",),
            vmem_limit_bytes=32 * 1024 * 1024),
    )(snow, mask, bmask)

    return snow_out.reshape(N, C, H, W)


# ----------------------- pure-JAX reference (for check) ----------------------
def _ref_forward(snow, mask):
    snow = jnp.asarray(snow, jnp.float32)
    mask = jnp.asarray(mask, jnp.float32)
    pads = [(0, 0), (0, 0), (1, 1), (1, 1)]

    def nbr_sum(x):
        return jax.lax.reduce_window(x, jnp.float32(0.0), jax.lax.add,
                                     (1, 1, 3, 3), (1, 1, 1, 1), pads)

    def nbr_max(x):
        return jax.lax.reduce_window(x, jnp.float32(-jnp.inf), jax.lax.max,
                                     (1, 1, 3, 3), (1, 1, 1, 1), pads)

    while True:
        max_get = nbr_max(snow)
        pre_mask = jnp.where(mask == 0.0, 0.0, 1.0)
        conv_sm = nbr_sum(snow * mask)
        conv_m = nbr_sum(mask)
        holes = conv_m == 0.0
        mask_sum = jnp.where(holes, 1.0, conv_m)
        out = jnp.where(holes, 0.0, conv_sm / mask_sum)
        new_mask = jnp.where(holes, 0.0, 1.0)
        s = int(jnp.sum(holes.astype(jnp.int32)))
        temp = 0.6 * max_get * (1.0 - pre_mask) + 0.4 * out * (1.0 - pre_mask)
        snow = snow * pre_mask + temp * new_mask
        mask = new_mask
        if s == 0:
            break
    return snow


if __name__ == "__main__":
    N, C, H, W = 2, 3, 16, 16  # module hard-codes 3 channels (groups=3)
    key = jax.random.PRNGKey(0)
    k_snow, k_mask = jax.random.split(key)

    snow = jax.random.normal(k_snow, (N, C, H, W), dtype=jnp.float32)
    mask = (jax.random.uniform(k_mask, (N, C, H, W)) < 0.3).astype(jnp.float32)
    # guarantee at least one valid pixel per plane so the loop terminates
    mask = mask.at[:, :, H // 2, W // 2].set(1.0)

    result = jax.block_until_ready(partial_avg_forward(snow, mask))

    ref = _ref_forward(snow, mask)
    assert result.shape == (N, C, H, W)
    assert np.all(np.isfinite(np.asarray(result)))
    np.testing.assert_allclose(np.asarray(result), np.asarray(ref),
                               rtol=1e-4, atol=1e-4)
    print("KERNEL_OK")
</pallas_src>

<mosaic_0001>
module attributes {stable_mosaic.version = 11 : i64} {
  func.func @_fused_kernel(%arg0: i32, %arg1: memref<1x6x256xf32, #tpu.memory_space<vmem>>, %arg2: memref<1x6x256xf32, #tpu.memory_space<vmem>>, %arg3: memref<4x256xf32, #tpu.memory_space<vmem>>, %arg4: memref<1x6x256xf32, #tpu.memory_space<vmem>>) attributes {dimension_semantics = [#tpu.dimension_semantics<parallel>], iteration_bounds = array<i64: 1>, scalar_prefetch = 0 : i64, scratch_operands = 0 : i64, tpu.core_type = #tpu.core_type<tc>, window_params = [{transform_indices = @transform_0, window_bounds = array<i64: 1, 6, 256>}, {transform_indices = @transform_1, window_bounds = array<i64: 1, 6, 256>}, {pipeline_mode = #tpu.pipeline_mode<synchronous>, transform_indices = @transform_2, window_bounds = array<i64: 4, 256>}, {transform_indices = @transform_3, window_bounds = array<i64: 1, 6, 256>}]} {
    %c0 = arith.constant 0 : index
    %c0_0 = arith.constant 0 : index
    %c0_1 = arith.constant 0 : index
    %0 = vector.load %arg1[%c0, %c0_0, %c0_1] : memref<1x6x256xf32, #tpu.memory_space<vmem>>, vector<1x6x256xf32>
    %1 = vector.shape_cast %0 : vector<1x6x256xf32> to vector<6x256xf32>
    %c0_2 = arith.constant 0 : index
    %c0_3 = arith.constant 0 : index
    %c0_4 = arith.constant 0 : index
    %2 = vector.load %arg2[%c0_2, %c0_3, %c0_4] : memref<1x6x256xf32, #tpu.memory_space<vmem>>, vector<1x6x256xf32>
    %3 = vector.shape_cast %2 : vector<1x6x256xf32> to vector<6x256xf32>
    %c0_5 = arith.constant 0 : index
    %c0_6 = arith.constant 0 : index
    %4 = vector.load %arg3[%c0_5, %c0_6] : memref<4x256xf32, #tpu.memory_space<vmem>>, vector<4x256xf32>
    %5 = vector.extract_strided_slice %4 {offsets = [0, 0], sizes = [1, 256], strides = [1, 1]} : vector<4x256xf32> to vector<1x256xf32>
    %6 = vector.shape_cast %5 : vector<1x256xf32> to vector<1x256xf32>
    %7 = vector.broadcast %6 : vector<1x256xf32> to vector<6x256xf32>
    %8 = vector.extract_strided_slice %4 {offsets = [1, 0], sizes = [1, 256], strides = [1, 1]} : vector<4x256xf32> to vector<1x256xf32>
    %9 = vector.shape_cast %8 : vector<1x256xf32> to vector<1x256xf32>
    %10 = vector.broadcast %9 : vector<1x256xf32> to vector<6x256xf32>
    %11 = vector.extract_strided_slice %4 {offsets = [2, 0], sizes = [1, 256], strides = [1, 1]} : vector<4x256xf32> to vector<1x256xf32>
    %12 = vector.shape_cast %11 : vector<1x256xf32> to vector<1x256xf32>
    %13 = vector.broadcast %12 : vector<1x256xf32> to vector<6x256xf32>
    %14 = vector.extract_strided_slice %4 {offsets = [3, 0], sizes = [1, 256], strides = [1, 1]} : vector<4x256xf32> to vector<1x256xf32>
    %15 = vector.shape_cast %14 : vector<1x256xf32> to vector<1x256xf32>
    %16 = vector.broadcast %15 : vector<1x256xf32> to vector<6x256xf32>
    %cst = arith.constant 0.000000e+00 : f32
    %17 = vector.broadcast %cst : f32 to vector<6x256xf32>
    %18 = arith.cmpf one, %7, %17 : vector<6x256xf32>
    %cst_7 = arith.constant 0.000000e+00 : f32
    %19 = vector.broadcast %cst_7 : f32 to vector<6x256xf32>
    %20 = arith.cmpf one, %10, %19 : vector<6x256xf32>
    %cst_8 = arith.constant 0.000000e+00 : f32
    %21 = vector.broadcast %cst_8 : f32 to vector<6x256xf32>
    %22 = arith.cmpf one, %13, %21 : vector<6x256xf32>
    %cst_9 = arith.constant 0.000000e+00 : f32
    %23 = vector.broadcast %cst_9 : f32 to vector<6x256xf32>
    %24 = arith.cmpf one, %16, %23 : vector<6x256xf32>
    %cst_10 = arith.constant 0.000000e+00 : f32
    %25 = vector.broadcast %cst_10 : f32 to vector<6x256xf32>
    %26 = arith.cmpf oeq, %3, %25 : vector<6x256xf32>
    %cst_11 = arith.constant 0.000000e+00 : f32
    %cst_12 = arith.constant 1.000000e+00 : f32
    %27 = vector.broadcast %cst_11 : f32 to vector<6x256xf32>
    %28 = vector.broadcast %cst_12 : f32 to vector<6x256xf32>
    %29 = arith.select %26, %27, %28 : vector<6x256xi1>, vector<6x256xf32>
    %c240_i32 = arith.constant 240 : i32
    %30 = tpu.dynamic_rotate %1 by %c240_i32 dim 1 : vector<6x256xf32>, i32 -> vector<6x256xf32>
    %cst_13 = arith.constant 0xFF800000 : f32
    %31 = vector.broadcast %cst_13 : f32 to vector<6x256xf32>
    %32 = arith.select %20, %30, %31 : vector<6x256xi1>, vector<6x256xf32>
    %c16_i32 = arith.constant 16 : i32
    %33 = tpu.dynamic_rotate %1 by %c16_i32 dim 1 : vector<6x256xf32>, i32 -> vector<6x256xf32>
    %cst_14 = arith.constant 0xFF800000 : f32
    %34 = vector.broadcast %cst_14 : f32 to vector<6x256xf32>
    %35 = arith.select %18, %33, %34 : vector<6x256xi1>, vector<6x256xf32>
    %36 = arith.maximumf %32, %35 : vector<6x256xf32>
    %37 = arith.maximumf %1, %36 : vector<6x256xf32>
    %c255_i32 = arith.constant 255 : i32
    %38 = tpu.dynamic_rotate %37 by %c255_i32 dim 1 : vector<6x256xf32>, i32 -> vector<6x256xf32>
    %cst_15 = arith.constant 0xFF800000 : f32
    %39 = vector.broadcast %cst_15 : f32 to vector<6x256xf32>
    %40 = arith.select %24, %38, %39 : vector<6x256xi1>, vector<6x256xf32>
    %c1_i32 = arith.constant 1 : i32
    %41 = tpu.dynamic_rotate %37 by %c1_i32 dim 1 : vector<6x256xf32>, i32 -> vector<6x256xf32>
    %cst_16 = arith.constant 0xFF800000 : f32
    %42 = vector.broadcast %cst_16 : f32 to vector<6x256xf32>
    %43 = arith.select %22, %41, %42 : vector<6x256xi1>, vector<6x256xf32>
    %44 = arith.maximumf %40, %43 : vector<6x256xf32>
    %45 = arith.maximumf %37, %44 : vector<6x256xf32>
    %46 = arith.mulf %1, %3 : vector<6x256xf32>
    %c240_i32_17 = arith.constant 240 : i32
    %47 = tpu.dynamic_rotate %46 by %c240_i32_17 dim 1 : vector<6x256xf32>, i32 -> vector<6x256xf32>
    %48 = arith.mulf %47, %10 : vector<6x256xf32>
    %49 = arith.addf %46, %48 : vector<6x256xf32>
    %c16_i32_18 = arith.constant 16 : i32
    %50 = tpu.dynamic_rotate %46 by %c16_i32_18 dim 1 : vector<6x256xf32>, i32 -> vector<6x256xf32>
    %51 = arith.mulf %50, %7 : vector<6x256xf32>
    %52 = arith.addf %49, %51 : vector<6x256xf32>
    %c255_i32_19 = arith.constant 255 : i32
    %53 = tpu.dynamic_rotate %52 by %c255_i32_19 dim 1 : vector<6x256xf32>, i32 -> vector<6x256xf32>
    %54 = arith.mulf %53, %16 : vector<6x256xf32>
    %55 = arith.addf %52, %54 : vector<6x256xf32>
    %c1_i32_20 = arith.constant 1 : i32
    %56 = tpu.dynamic_rotate %52 by %c1_i32_20 dim 1 : vector<6x256xf32>, i32 -> vector<6x256xf32>
    %57 = arith.mulf %56, %13 : vector<6x256xf32>
    %58 = arith.addf %55, %57 : vector<6x256xf32>
    %c240_i32_21 = arith.constant 240 : i32
    %59 = tpu.dynamic_rotate %3 by %c240_i32_21 dim 1 : vector<6x256xf32>, i32 -> vector<6x256xf32>
    %60 = arith.mulf %59, %10 : vector<6x256xf32>
    %61 = arith.addf %3, %60 : vector<6x256xf32>
    %c16_i32_22 = arith.constant 16 : i32
    %62 = tpu.dynamic_rotate %3 by %c16_i32_22 dim 1 : vector<6x256xf32>, i32 -> vector<6x256xf32>
    %63 = arith.mulf %62, %7 : vector<6x256xf32>
    %64 = arith.addf %61, %63 : vector<6x256xf32>
    %c255_i32_23 = arith.constant 255 : i32
    %65 = tpu.dynamic_rotate %64 by %c255_i32_23 dim 1 : vector<6x256xf32>, i32 -> vector<6x256xf32>
    %66 = arith.mulf %65, %16 : vector<6x256xf32>
    %67 = arith.addf %64, %66 : vector<6x256xf32>
    %c1_i32_24 = arith.constant 1 : i32
    %68 = tpu.dynamic_rotate %64 by %c1_i32_24 dim 1 : vector<6x256xf32>, i32 -> vector<6x256xf32>
    %69 = arith.mulf %68, %13 : vector<6x256xf32>
    %70 = arith.addf %67, %69 : vector<6x256xf32>
    %cst_25 = arith.constant 0.000000e+00 : f32
    %71 = vector.broadcast %cst_25 : f32 to vector<6x256xf32>
    %72 = arith.cmpf oeq, %70, %71 : vector<6x256xf32>
    %cst_26 = arith.constant 1.000000e+00 : f32
    %73 = vector.broadcast %cst_26 : f32 to vector<6x256xf32>
    %74 = arith.select %72, %73, %70 : vector<6x256xi1>, vector<6x256xf32>
    %75 = tpu.reciprocal %74 {approx = true} : vector<6x256xf32> -> vector<6x256xf32>
    %76 = arith.mulf %74, %75 : vector<6x256xf32>
    %cst_27 = arith.constant 2.000000e+00 : f32
    %77 = vector.broadcast %cst_27 : f32 to vector<6x256xf32>
    %78 = arith.subf %77, %76 : vector<6x256xf32>
    %79 = arith.mulf %75, %78 : vector<6x256xf32>
    %80 = arith.mulf %58, %79 : vector<6x256xf32>
    %cst_28 = arith.constant 0.000000e+00 : f32
    %81 = vector.broadcast %cst_28 : f32 to vector<6x256xf32>
    %82 = arith.select %72, %81, %80 : vector<6x256xi1>, vector<6x256xf32>
    %cst_29 = arith.constant 0.000000e+00 : f32
    %cst_30 = arith.constant 1.000000e+00 : f32
    %83 = vector.broadcast %cst_29 : f32 to vector<6x256xf32>
    %84 = vector.broadcast %cst_30 : f32 to vector<6x256xf32>
    %85 = arith.select %72, %83, %84 : vector<6x256xi1>, vector<6x256xf32>
    %86 = arith.mulf %1, %29 : vector<6x256xf32>
    %cst_31 = arith.constant 6.000000e-01 : f32
    %87 = vector.broadcast %cst_31 : f32 to vector<6x256xf32>
    %88 = arith.mulf %87, %45 : vector<6x256xf32>
    %cst_32 = arith.constant 4.000000e-01 : f32
    %89 = vector.broadcast %cst_32 : f32 to vector<6x256xf32>
    %90 = arith.mulf %89, %82 : vector<6x256xf32>
    %91 = arith.addf %88, %90 : vector<6x256xf32>
    %92 = arith.subf %85, %29 : vector<6x256xf32>
    %93 = arith.mulf %91, %92 : vector<6x256xf32>
    %94 = arith.addf %86, %93 : vector<6x256xf32>
    %95 = vector.shape_cast %70 : vector<6x256xf32> to vector<1x6x256xf32>
    %cst_33 = arith.constant dense<0x7F800000> : vector<1xf32>
    %96 = vector.multi_reduction <minimumf>, %95, %cst_33 [1, 2] : vector<1x6x256xf32> to vector<1xf32>
    %97 = vector.shape_cast %96 : vector<1xf32> to vector<1x1x1xf32>
    %98 = vector.extract %97[0, 0, 0] : f32 from vector<1x1x1xf32>
    %cst_34 = arith.constant 0xFF800000 : f32
    %c1_i32_35 = arith.constant 1 : i32
    %99:4 = scf.while (%arg5 = %94, %arg6 = %85, %arg7 = %98, %arg8 = %c1_i32_35) : (vector<6x256xf32>, vector<6x256xf32>, f32, i32) -> (vector<6x256xf32>, vector<6x256xf32>, f32, i32) {
      %cst_39 = arith.constant 0.000000e+00 : f32
      %103 = arith.cmpf oeq, %arg7, %cst_39 : f32
      %c40_i32 = arith.constant 40 : i32
      %104 = arith.cmpi slt, %arg8, %c40_i32 : i32
      %105 = arith.andi %103, %104 : i1
      scf.condition(%105) %arg5, %arg6, %arg7, %arg8 : vector<6x256xf32>, vector<6x256xf32>, f32, i32
    } do {
    ^bb0(%arg5: vector<6x256xf32>, %arg6: vector<6x256xf32>, %arg7: f32, %arg8: i32):
      %c240_i32_39 = arith.constant 240 : i32
      %103 = tpu.dynamic_rotate %arg5 by %c240_i32_39 dim 1 : vector<6x256xf32>, i32 -> vector<6x256xf32>
      %104 = vector.broadcast %cst_34 : f32 to vector<6x256xf32>
      %105 = arith.select %20, %103, %104 : vector<6x256xi1>, vector<6x256xf32>
      %c16_i32_40 = arith.constant 16 : i32
      %106 = tpu.dynamic_rotate %arg5 by %c16_i32_40 dim 1 : vector<6x256xf32>, i32 -> vector<6x256xf32>
      %107 = vector.broadcast %cst_34 : f32 to vector<6x256xf32>
      %108 = arith.select %18, %106, %107 : vector<6x256xi1>, vector<6x256xf32>
      %109 = arith.maximumf %105, %108 : vector<6x256xf32>
      %110 = arith.maximumf %arg5, %109 : vector<6x256xf32>
      %c255_i32_41 = arith.constant 255 : i32
      %111 = tpu.dynamic_rotate %110 by %c255_i32_41 dim 1 : vector<6x256xf32>, i32 -> vector<6x256xf32>
      %112 = vector.broadcast %cst_34 : f32 to vector<6x256xf32>
      %113 = arith.select %24, %111, %112 : vector<6x256xi1>, vector<6x256xf32>
      %c1_i32_42 = arith.constant 1 : i32
      %114 = tpu.dynamic_rotate %110 by %c1_i32_42 dim 1 : vector<6x256xf32>, i32 -> vector<6x256xf32>
      %115 = vector.broadcast %cst_34 : f32 to vector<6x256xf32>
      %116 = arith.select %22, %114, %115 : vector<6x256xi1>, vector<6x256xf32>
      %117 = arith.maximumf %113, %116 : vector<6x256xf32>
      %118 = arith.maximumf %110, %117 : vector<6x256xf32>
      %119 = arith.mulf %arg5, %arg6 : vector<6x256xf32>
      %c240_i32_43 = arith.constant 240 : i32
      %120 = tpu.dynamic_rotate %119 by %c240_i32_43 dim 1 : vector<6x256xf32>, i32 -> vector<6x256xf32>
      %121 = arith.mulf %120, %10 : vector<6x256xf32>
      %122 = arith.addf %119, %121 : vector<6x256xf32>
      %c16_i32_44 = arith.constant 16 : i32
      %123 = tpu.dynamic_rotate %119 by %c16_i32_44 dim 1 : vector<6x256xf32>, i32 -> vector<6x256xf32>
      %124 = arith.mulf %123, %7 : vector<6x256xf32>
      %125 = arith.addf %122, %124 : vector<6x256xf32>
      %c255_i32_45 = arith.constant 255 : i32
      %126 = tpu.dynamic_rotate %125 by %c255_i32_45 dim 1 : vector<6x256xf32>, i32 -> vector<6x256xf32>
      %127 = arith.mulf %126, %16 : vector<6x256xf32>
      %128 = arith.addf %125, %127 : vector<6x256xf32>
      %c1_i32_46 = arith.constant 1 : i32
      %129 = tpu.dynamic_rotate %125 by %c1_i32_46 dim 1 : vector<6x256xf32>, i32 -> vector<6x256xf32>
      %130 = arith.mulf %129, %13 : vector<6x256xf32>
      %131 = arith.addf %128, %130 : vector<6x256xf32>
      %c240_i32_47 = arith.constant 240 : i32
      %132 = tpu.dynamic_rotate %arg6 by %c240_i32_47 dim 1 : vector<6x256xf32>, i32 -> vector<6x256xf32>
      %133 = arith.mulf %132, %10 : vector<6x256xf32>
      %134 = arith.addf %arg6, %133 : vector<6x256xf32>
      %c16_i32_48 = arith.constant 16 : i32
      %135 = tpu.dynamic_rotate %arg6 by %c16_i32_48 dim 1 : vector<6x256xf32>, i32 -> vector<6x256xf32>
      %136 = arith.mulf %135, %7 : vector<6x256xf32>
      %137 = arith.addf %134, %136 : vector<6x256xf32>
      %c255_i32_49 = arith.constant 255 : i32
      %138 = tpu.dynamic_rotate %137 by %c255_i32_49 dim 1 : vector<6x256xf32>, i32 -> vector<6x256xf32>
      %139 = arith.mulf %138, %16 : vector<6x256xf32>
      %140 = arith.addf %137, %139 : vector<6x256xf32>
      %c1_i32_50 = arith.constant 1 : i32
      %141 = tpu.dynamic_rotate %137 by %c1_i32_50 dim 1 : vector<6x256xf32>, i32 -> vector<6x256xf32>
      %142 = arith.mulf %141, %13 : vector<6x256xf32>
      %143 = arith.addf %140, %142 : vector<6x256xf32>
      %cst_51 = arith.constant 0.000000e+00 : f32
      %144 = vector.broadcast %cst_51 : f32 to vector<6x256xf32>
      %145 = arith.cmpf oeq, %143, %144 : vector<6x256xf32>
      %cst_52 = arith.constant 1.000000e+00 : f32
      %146 = vector.broadcast %cst_52 : f32 to vector<6x256xf32>
      %147 = arith.select %145, %146, %143 : vector<6x256xi1>, vector<6x256xf32>
      %148 = tpu.reciprocal %147 {approx = true} : vector<6x256xf32> -> vector<6x256xf32>
      %149 = arith.mulf %147, %148 : vector<6x256xf32>
      %cst_53 = arith.constant 2.000000e+00 : f32
      %150 = vector.broadcast %cst_53 : f32 to vector<6x256xf32>
      %151 = arith.subf %150, %149 : vector<6x256xf32>
      %152 = arith.mulf %148, %151 : vector<6x256xf32>
      %153 = arith.mulf %131, %152 : vector<6x256xf32>
      %cst_54 = arith.constant 0.000000e+00 : f32
      %154 = vector.broadcast %cst_54 : f32 to vector<6x256xf32>
      %155 = arith.select %145, %154, %153 : vector<6x256xi1>, vector<6x256xf32>
      %cst_55 = arith.constant 0.000000e+00 : f32
      %cst_56 = arith.constant 1.000000e+00 : f32
      %156 = vector.broadcast %cst_55 : f32 to vector<6x256xf32>
      %157 = vector.broadcast %cst_56 : f32 to vector<6x256xf32>
      %158 = arith.select %145, %156, %157 : vector<6x256xi1>, vector<6x256xf32>
      %159 = arith.mulf %arg5, %arg6 : vector<6x256xf32>
      %cst_57 = arith.constant 6.000000e-01 : f32
      %160 = vector.broadcast %cst_57 : f32 to vector<6x256xf32>
      %161 = arith.mulf %160, %118 : vector<6x256xf32>
      %cst_58 = arith.constant 4.000000e-01 : f32
      %162 = vector.broadcast %cst_58 : f32 to vector<6x256xf32>
      %163 = arith.mulf %162, %155 : vector<6x256xf32>
      %164 = arith.addf %161, %163 : vector<6x256xf32>
      %165 = arith.subf %158, %arg6 : vector<6x256xf32>
      %166 = arith.mulf %164, %165 : vector<6x256xf32>
      %167 = arith.addf %159, %166 : vector<6x256xf32>
      %168 = vector.shape_cast %143 : vector<6x256xf32> to vector<1x6x256xf32>
      %cst_59 = arith.constant dense<0x7F800000> : vector<1xf32>
      %169 = vector.multi_reduction <minimumf>, %168, %cst_59 [1, 2] : vector<1x6x256xf32> to vector<1xf32>
      %170 = vector.shape_cast %169 : vector<1xf32> to vector<1x1x1xf32>
      %171 = vector.extract %170[0, 0, 0] : f32 from vector<1x1x1xf32>
      %c240_i32_60 = arith.constant 240 : i32
      %172 = tpu.dynamic_rotate %167 by %c240_i32_60 dim 1 : vector<6x256xf32>, i32 -> vector<6x256xf32>
      %173 = vector.broadcast %cst_34 : f32 to vector<6x256xf32>
      %174 = arith.select %20, %172, %173 : vector<6x256xi1>, vector<6x256xf32>
      %c16_i32_61 = arith.constant 16 : i32
      %175 = tpu.dynamic_rotate %167 by %c16_i32_61 dim 1 : vector<6x256xf32>, i32 -> vector<6x256xf32>
      %176 = vector.broadcast %cst_34 : f32 to vector<6x256xf32>
      %177 = arith.select %18, %175, %176 : vector<6x256xi1>, vector<6x256xf32>
      %178 = arith.maximumf %174, %177 : vector<6x256xf32>
      %179 = arith.maximumf %167, %178 : vector<6x256xf32>
      %c255_i32_62 = arith.constant 255 : i32
      %180 = tpu.dynamic_rotate %179 by %c255_i32_62 dim 1 : vector<6x256xf32>, i32 -> vector<6x256xf32>
      %181 = vector.broadcast %cst_34 : f32 to vector<6x256xf32>
      %182 = arith.select %24, %180, %181 : vector<6x256xi1>, vector<6x256xf32>
      %c1_i32_63 = arith.constant 1 : i32
      %183 = tpu.dynamic_rotate %179 by %c1_i32_63 dim 1 : vector<6x256xf32>, i32 -> vector<6x256xf32>
      %184 = vector.broadcast %cst_34 : f32 to vector<6x256xf32>
      %185 = arith.select %22, %183, %184 : vector<6x256xi1>, vector<6x256xf32>
      %186 = arith.maximumf %182, %185 : vector<6x256xf32>
      %187 = arith.maximumf %179, %186 : vector<6x256xf32>
      %188 = arith.mulf %167, %158 : vector<6x256xf32>
      %c240_i32_64 = arith.constant 240 : i32
      %189 = tpu.dynamic_rotate %188 by %c240_i32_64 dim 1 : vector<6x256xf32>, i32 -> vector<6x256xf32>
      %190 = arith.mulf %189, %10 : vector<6x256xf32>
      %191 = arith.addf %188, %190 : vector<6x256xf32>
      %c16_i32_65 = arith.constant 16 : i32
      %192 = tpu.dynamic_rotate %188 by %c16_i32_65 dim 1 : vector<6x256xf32>, i32 -> vector<6x256xf32>
      %193 = arith.mulf %192, %7 : vector<6x256xf32>
      %194 = arith.addf %191, %193 : vector<6x256xf32>
      %c255_i32_66 = arith.constant 255 : i32
      %195 = tpu.dynamic_rotate %194 by %c255_i32_66 dim 1 : vector<6x256xf32>, i32 -> vector<6x256xf32>
      %196 = arith.mulf %195, %16 : vector<6x256xf32>
      %197 = arith.addf %194, %196 : vector<6x256xf32>
      %c1_i32_67 = arith.constant 1 : i32
      %198 = tpu.dynamic_rotate %194 by %c1_i32_67 dim 1 : vector<6x256xf32>, i32 -> vector<6x256xf32>
      %199 = arith.mulf %198, %13 : vector<6x256xf32>
      %200 = arith.addf %197, %199 : vector<6x256xf32>
      %c240_i32_68 = arith.constant 240 : i32
      %201 = tpu.dynamic_rotate %158 by %c240_i32_68 dim 1 : vector<6x256xf32>, i32 -> vector<6x256xf32>
      %202 = arith.mulf %201, %10 : vector<6x256xf32>
      %203 = arith.addf %158, %202 : vector<6x256xf32>
      %c16_i32_69 = arith.constant 16 : i32
      %204 = tpu.dynamic_rotate %158 by %c16_i32_69 dim 1 : vector<6x256xf32>, i32 -> vector<6x256xf32>
      %205 = arith.mulf %204, %7 : vector<6x256xf32>
      %206 = arith.addf %203, %205 : vector<6x256xf32>
      %c255_i32_70 = arith.constant 255 : i32
      %207 = tpu.dynamic_rotate %206 by %c255_i32_70 dim 1 : vector<6x256xf32>, i32 -> vector<6x256xf32>
      %208 = arith.mulf %207, %16 : vector<6x256xf32>
      %209 = arith.addf %206, %208 : vector<6x256xf32>
      %c1_i32_71 = arith.constant 1 : i32
      %210 = tpu.dynamic_rotate %206 by %c1_i32_71 dim 1 : vector<6x256xf32>, i32 -> vector<6x256xf32>
      %211 = arith.mulf %210, %13 : vector<6x256xf32>
      %212 = arith.addf %209, %211 : vector<6x256xf32>
      %cst_72 = arith.constant 0.000000e+00 : f32
      %213 = vector.broadcast %cst_72 : f32 to vector<6x256xf32>
      %214 = arith.cmpf oeq, %212, %213 : vector<6x256xf32>
      %cst_73 = arith.constant 1.000000e+00 : f32
      %215 = vector.broadcast %cst_73 : f32 to vector<6x256xf32>
      %216 = arith.select %214, %215, %212 : vector<6x256xi1>, vector<6x256xf32>
      %217 = tpu.reciprocal %216 {approx = true} : vector<6x256xf32> -> vector<6x256xf32>
      %218 = arith.mulf %216, %217 : vector<6x256xf32>
      %cst_74 = arith.constant 2.000000e+00 : f32
      %219 = vector.broadcast %cst_74 : f32 to vector<6x256xf32>
      %220 = arith.subf %219, %218 : vector<6x256xf32>
      %221 = arith.mulf %217, %220 : vector<6x256xf32>
      %222 = arith.mulf %200, %221 : vector<6x256xf32>
      %cst_75 = arith.constant 0.000000e+00 : f32
      %223 = vector.broadcast %cst_75 : f32 to vector<6x256xf32>
      %224 = arith.select %214, %223, %222 : vector<6x256xi1>, vector<6x256xf32>
      %cst_76 = arith.constant 0.000000e+00 : f32
      %cst_77 = arith.constant 1.000000e+00 : f32
      %225 = vector.broadcast %cst_76 : f32 to vector<6x256xf32>
      %226 = vector.broadcast %cst_77 : f32 to vector<6x256xf32>
      %227 = arith.select %214, %225, %226 : vector<6x256xi1>, vector<6x256xf32>
      %228 = arith.mulf %167, %158 : vector<6x256xf32>
      %cst_78 = arith.constant 6.000000e-01 : f32
      %229 = vector.broadcast %cst_78 : f32 to vector<6x256xf32>
      %230 = arith.mulf %229, %187 : vector<6x256xf32>
      %cst_79 = arith.constant 4.000000e-01 : f32
      %231 = vector.broadcast %cst_79 : f32 to vector<6x256xf32>
      %232 = arith.mulf %231, %224 : vector<6x256xf32>
      %233 = arith.addf %230, %232 : vector<6x256xf32>
      %234 = arith.subf %227, %158 : vector<6x256xf32>
      %235 = arith.mulf %233, %234 : vector<6x256xf32>
      %236 = arith.addf %228, %235 : vector<6x256xf32>
      %237 = vector.shape_cast %212 : vector<6x256xf32> to vector<1x6x256xf32>
      %cst_80 = arith.constant dense<0x7F800000> : vector<1xf32>
      %238 = vector.multi_reduction <minimumf>, %237, %cst_80 [1, 2] : vector<1x6x256xf32> to vector<1xf32>
      %239 = vector.shape_cast %238 : vector<1xf32> to vector<1x1x1xf32>
      %240 = vector.extract %239[0, 0, 0] : f32 from vector<1x1x1xf32>
      %c2_i32 = arith.constant 2 : i32
      %241 = arith.addi %arg8, %c2_i32 : i32
      scf.yield %236, %227, %240, %241 : vector<6x256xf32>, vector<6x256xf32>, f32, i32
    }
    %c0_36 = arith.constant 0 : index
    %c0_37 = arith.constant 0 : index
    %c0_38 = arith.constant 0 : index
    %100 = vector.load %arg4[%c0_36, %c0_37, %c0_38] : memref<1x6x256xf32, #tpu.memory_space<vmem>>, vector<1x6x256xf32>
    %101 = vector.shape_cast %100 : vector<1x6x256xf32> to vector<6x256xf32>
    %102 = vector.shape_cast %99#0 : vector<6x256xf32> to vector<1x6x256xf32>
    tpu.vector_store %arg4[%c0_36, %c0_37, %c0_38], %102 {strides = array<i32>} : memref<1x6x256xf32, #tpu.memory_space<vmem>>, vector<1x6x256xf32>,
    return
  }
  func.func @transform_0(%arg0: i32) -> (i32, i32, i32) {
    %c0_i32 = arith.constant 0 : i32
    %c0_i32_0 = arith.constant 0 : i32
    %c0_i32_1 = arith.constant 0 : i32
    return %arg0, %c0_i32, %c0_i32_0 : i32, i32, i32
  }
  func.func @transform_1(%arg0: i32) -> (i32, i32, i32) {
    %c0_i32 = arith.constant 0 : i32
    %c0_i32_0 = arith.constant 0 : i32
    %c0_i32_1 = arith.constant 0 : i32
    return %arg0, %c0_i32, %c0_i32_0 : i32, i32, i32
  }
  func.func @transform_2(%arg0: i32) -> (i32, i32) {
    %c0_i32 = arith.constant 0 : i32
    %c0_i32_0 = arith.constant 0 : i32
    %c0_i32_1 = arith.constant 0 : i32
    return %c0_i32, %c0_i32_0 : i32, i32
  }
  func.func @transform_3(%arg0: i32) -> (i32, i32, i32) {
    %c0_i32 = arith.constant 0 : i32
    %c0_i32_0 = arith.constant 0 : i32
    %c0_i32_1 = arith.constant 0 : i32
    return %arg0, %c0_i32, %c0_i32_0 : i32, i32, i32
  }
}

</mosaic_0001>

<llo_original>
// kernel: partial_avg_forward.1
$region0: #{partial_avg_forward.1}
  #allocation0 [shape = 'u32[]', space=smem, size = 0x4, offset = 0x4, fixed_abs, tag = 'smem constant byte address 0x4 - core index']
  #allocation1 [shape = 'u32[144,128]{1,0:T(1,128)}', space=vmem, size = 0x12000, scoped, tag = 'internal scratch']
  %s0 = inlined_call_operand.vmem [shape: f32[1,6,256], index: 0, kind: input, shape index: {}]
  %s1 = inlined_call_operand.vmem [shape: f32[1,6,256], index: 1, kind: input, shape index: {}]
  %s2 = inlined_call_operand.vmem [shape: f32[4,256], index: 2, kind: input, shape index: {}]
  %s3 = inlined_call_operand.vmem [shape: f32[1,6,256], index: 3, kind: output, shape index: {}]
  %s4 = sld [smem:[#allocation0]]
  $region29: #{partial_avg_forward.1} parent=0
    _
  %s6 = ssub.s32 1, %s4
  %s7 = scalar_select 0, %s6, %s4
  // Predicated region
  $region2: #{partial_avg_forward.1} parent=0 // pred_check
    _
  $region3: #{partial_avg_forward.1} parent=0 // pred_check_branch
    %9 = sbr.rel (0) target = $region5
  $region4: #{partial_avg_forward.1} parent=0 // pred_region
    _
  $region5: #{partial_avg_forward.1} parent=0 // pred_fallthru
    _
  // Predicated region
  $region6: #{partial_avg_forward.1} parent=0 // pred_check
    _
  $region7: #{partial_avg_forward.1} parent=0 // pred_check_branch
    %11 = sbr.rel (0) target = $region9
  $region8: #{partial_avg_forward.1} parent=0 // pred_region
    _
  $region9: #{partial_avg_forward.1} parent=0 // pred_fallthru
    _
  // Predicated region
  $region10: #{partial_avg_forward.1} parent=0 // pred_check
    _
  $region11: #{partial_avg_forward.1} parent=0 // pred_check_branch
    %13 = sbr.rel (0) target = $region13
  $region12: #{partial_avg_forward.1} parent=0 // pred_region
    _
  $region13: #{partial_avg_forward.1} parent=0 // pred_fallthru
    _
  %v14 = vld [vmem:[%s0] sm:$0x3f]
  %v15 = vld [vmem:[%s0 + $0x8] sm:$0x3f]
  %v16 = vld [vmem:[%s1] sm:$0x3f]
  %v17 = vld [vmem:[%s1 + $0x8] sm:$0x3f]
  %v18 = vld [vmem:[%s2] sm:$0xff]
  %v20 = vlaneseq
  %v21 = vshrl.u32 %v20, 7
  %v22 = vsub.s32 0, %v21
  %v23 = vrot.slane %v18, %v22
  %v24 = vlaneseq
  %v25 = vshrl.u32 %v24, 7
  %v26 = vsub.s32 4, %v25
  %v27 = vrot.slane %v18, %v26
  %v30 = vlaneseq
  %v31 = vshrl.u32 %v30, 7
  %v32 = vsub.s32 0, %v31
  %v33 = vrot.slane %v23, %v32
  %v34 = vlaneseq
  %v35 = vshrl.u32 %v34, 7
  %v36 = vsub.s32 0, %v35
  %v37 = vrot.slane %v27, %v36
  %v38 = vlaneseq
  %v39 = vshrl.u32 %v38, 7
  %v40 = vsub.s32 1, %v39
  %v41 = vrot.slane %v18, %v40
  %v42 = vlaneseq
  %v43 = vshrl.u32 %v42, 7
  %v44 = vsub.s32 5, %v43
  %v45 = vrot.slane %v18, %v44
  %v48 = vlaneseq
  %v49 = vshrl.u32 %v48, 7
  %v50 = vsub.s32 1, %v49
  %v51 = vrot.slane %v41, %v50
  %v52 = vlaneseq
  %v53 = vshrl.u32 %v52, 7
  %v54 = vsub.s32 1, %v53
  %v55 = vrot.slane %v45, %v54
  %v56 = vlaneseq
  %v57 = vshrl.u32 %v56, 7
  %v58 = vsub.s32 2, %v57
  %v59 = vrot.slane %v18, %v58
  %v60 = vlaneseq
  %v61 = vshrl.u32 %v60, 7
  %v62 = vsub.s32 6, %v61
  %v63 = vrot.slane %v18, %v62
  %v66 = vlaneseq
  %v67 = vshrl.u32 %v66, 7
  %v68 = vsub.s32 2, %v67
  %v69 = vrot.slane %v59, %v68
  %v70 = vlaneseq
  %v71 = vshrl.u32 %v70, 7
  %v72 = vsub.s32 2, %v71
  %v73 = vrot.slane %v63, %v72
  %v74 = vlaneseq
  %v75 = vshrl.u32 %v74, 7
  %v76 = vsub.s32 3, %v75
  %v77 = vrot.slane %v18, %v76
  %v78 = vlaneseq
  %v79 = vshrl.u32 %v78, 7
  %v80 = vsub.s32 7, %v79
  %v81 = vrot.slane %v18, %v80
  %v84 = vlaneseq
  %v85 = vshrl.u32 %v84, 7
  %v86 = vsub.s32 3, %v85
  %v87 = vrot.slane %v77, %v86
  %v88 = vlaneseq
  %v89 = vshrl.u32 %v88, 7
  %v90 = vsub.s32 3, %v89
  %v91 = vrot.slane %v81, %v90
  %vm92 = vcmp.ne.f32.partialorder %v33, 0.0
  %vm93 = vcmp.ne.f32.partialorder %v37, 0.0
  %vm94 = vcmp.ne.f32.partialorder %v51, 0.0
  %vm95 = vcmp.ne.f32.partialorder %v55, 0.0
  %vm96 = vcmp.ne.f32.partialorder %v69, 0.0
  %vm97 = vcmp.ne.f32.partialorder %v73, 0.0
  %vm98 = vcmp.ne.f32.partialorder %v87, 0.0
  %vm99 = vcmp.ne.f32.partialorder %v91, 0.0
  %vm100 = vcmp.eq.f32.partialorder %v16, 0.0
  %vm101 = vcmp.eq.f32.partialorder %v17, 0.0
  %v102 = vsel %vm100, 0.0, 1.0
  %v103 = vsel %vm101, 0.0, 1.0
  %104 = vrot.lane.b32.xlu0 %v14, 112
  %v105 = vpop.permute.xlu0 %104
  %106 = vrot.lane.b32.xlu0 %v15, 112
  %v107 = vpop.permute.xlu0 %106
  %v108 = vlaneseq
  %v109 = vand.u32 %v108, 127
  %vm110 = vcmp.lt.s32.totalorder %v109, 112
  %v111 = vsel %vm110, %v105, %v107
  %v112 = vsel %vm110, %v107, %v105
  %v113 = vsel %vm94, %v111, -inf
  %v114 = vsel %vm95, %v112, -inf
  %115 = vrot.lane.b32.xlu0 %v14, 16
  %v116 = vpop.permute.xlu0 %115
  %117 = vrot.lane.b32.xlu0 %v15, 16
  %v118 = vpop.permute.xlu0 %117
  %vm119 = vcmp.lt.s32.totalorder %v109, 16
  %v120 = vsel %vm119, %v116, %v118
  %v121 = vsel %vm119, %v118, %v116
  %v122 = vsel %vm92, %v121, -inf
  %v123 = vsel %vm93, %v120, -inf
  %v124 = vmax.f32 %v113, %v122
  %v125 = vmax.f32 %v114, %v123
  %v126 = vmax.f32 %v14, %v124
  %v127 = vmax.f32 %v15, %v125
  %128 = vrot.lane.b32.xlu0 %v126, 127
  %v129 = vpop.permute.xlu0 %128
  %130 = vrot.lane.b32.xlu0 %v127, 127
  %v131 = vpop.permute.xlu0 %130
  %vm132 = vcmp.lt.s32.totalorder %v109, 127
  %v133 = vsel %vm132, %v129, %v131
  %v134 = vsel %vm132, %v131, %v129
  %v135 = vsel %vm98, %v133, -inf
  %v136 = vsel %vm99, %v134, -inf
  %137 = vrot.lane.b32.xlu0 %v126, 1
  %v138 = vpop.permute.xlu0 %137
  %139 = vrot.lane.b32.xlu0 %v127, 1
  %v140 = vpop.permute.xlu0 %139
  %vm141 = vcmp.lt.s32.totalorder %v109, 1
  %v142 = vsel %vm141, %v138, %v140
  %v143 = vsel %vm141, %v140, %v138
  %v144 = vsel %vm96, %v143, -inf
  %v145 = vsel %vm97, %v142, -inf
  %v146 = vmax.f32 %v135, %v144
  %v147 = vmax.f32 %v136, %v145
  %v148 = vmax.f32 %v126, %v146
  %v149 = vmax.f32 %v127, %v147
  %v150 = vmul.f32 %v14, %v16
  %v151 = vmul.f32 %v15, %v17
  %152 = vrot.lane.b32.xlu0 %v150, 112
  %v153 = vpop.permute.xlu0 %152
  %154 = vrot.lane.b32.xlu0 %v151, 112
  %v155 = vpop.permute.xlu0 %154
  %v156 = vsel %vm110, %v153, %v155
  %v157 = vsel %vm110, %v155, %v153
  %v158 = vmul.f32 %v156, %v51
  %v159 = vmul.f32 %v157, %v55
  %v160 = vadd.f32 %v150, %v158
  %v161 = vadd.f32 %v151, %v159
  %162 = vrot.lane.b32.xlu0 %v150, 16
  %v163 = vpop.permute.xlu0 %162
  %164 = vrot.lane.b32.xlu0 %v151, 16
  %v165 = vpop.permute.xlu0 %164
  %v166 = vsel %vm119, %v163, %v165
  %v167 = vsel %vm119, %v165, %v163
  %v168 = vmul.f32 %v167, %v33
  %v169 = vmul.f32 %v166, %v37
  %v170 = vadd.f32 %v160, %v168
  %v171 = vadd.f32 %v161, %v169
  %172 = vrot.lane.b32.xlu0 %v170, 127
  %v173 = vpop.permute.xlu0 %172
  %174 = vrot.lane.b32.xlu0 %v171, 127
  %v175 = vpop.permute.xlu0 %174
  %v176 = vsel %vm132, %v173, %v175
  %v177 = vsel %vm132, %v175, %v173
  %v178 = vmul.f32 %v176, %v87
  %v179 = vmul.f32 %v177, %v91
  %v180 = vadd.f32 %v170, %v178
  %v181 = vadd.f32 %v171, %v179
  %182 = vrot.lane.b32.xlu0 %v170, 1
  %v183 = vpop.permute.xlu0 %182
  %184 = vrot.lane.b32.xlu0 %v171, 1
  %v185 = vpop.permute.xlu0 %184
  %v186 = vsel %vm141, %v183, %v185
  %v187 = vsel %vm141, %v185, %v183
  %v188 = vmul.f32 %v187, %v69
  %v189 = vmul.f32 %v186, %v73
  %v190 = vadd.f32 %v180, %v188
  %v191 = vadd.f32 %v181, %v189
  %192 = vrot.lane.b32.xlu0 %v16, 112
  %v193 = vpop.permute.xlu0 %192
  %194 = vrot.lane.b32.xlu0 %v17, 112
  %v195 = vpop.permute.xlu0 %194
  %v196 = vsel %vm110, %v193, %v195
  %v197 = vsel %vm110, %v195, %v193
  %v198 = vmul.f32 %v196, %v51
  %v199 = vmul.f32 %v197, %v55
  %v200 = vadd.f32 %v16, %v198
  %v201 = vadd.f32 %v17, %v199
  %202 = vrot.lane.b32.xlu0 %v16, 16
  %v203 = vpop.permute.xlu0 %202
  %204 = vrot.lane.b32.xlu0 %v17, 16
  %v205 = vpop.permute.xlu0 %204
  %v206 = vsel %vm119, %v203, %v205
  %v207 = vsel %vm119, %v205, %v203
  %v208 = vmul.f32 %v207, %v33
  %v209 = vmul.f32 %v206, %v37
  %v210 = vadd.f32 %v200, %v208
  %v211 = vadd.f32 %v201, %v209
  %212 = vrot.lane.b32.xlu0 %v210, 127
  %v213 = vpop.permute.xlu0 %212
  %214 = vrot.lane.b32.xlu0 %v211, 127
  %v215 = vpop.permute.xlu0 %214
  %v216 = vsel %vm132, %v213, %v215
  %v217 = vsel %vm132, %v215, %v213
  %v218 = vmul.f32 %v216, %v87
  %v219 = vmul.f32 %v217, %v91
  %v220 = vadd.f32 %v210, %v218
  %v221 = vadd.f32 %v211, %v219
  %222 = vrot.lane.b32.xlu0 %v210, 1
  %v223 = vpop.permute.xlu0 %222
  %224 = vrot.lane.b32.xlu0 %v211, 1
  %v225 = vpop.permute.xlu0 %224
  %v226 = vsel %vm141, %v223, %v225
  %v227 = vsel %vm141, %v225, %v223
  %v228 = vmul.f32 %v227, %v69
  %v229 = vmul.f32 %v226, %v73
  %v230 = vadd.f32 %v220, %v228
  %v231 = vadd.f32 %v221, %v229
  %vm232 = vcmp.eq.f32.partialorder %v230, 0.0
  %vm233 = vcmp.eq.f32.partialorder %v231, 0.0
  %v234 = vsel %vm232, 1.0, %v230
  %v235 = vsel %vm233, 1.0, %v231
  %v236 = vrcp.pop %v234
  %v237 = vrcp.pop %v235
  %v238 = vmul.f32 %v234, %v236
  %v239 = vmul.f32 %v235, %v237
  %v240 = vsub.f32 2.0, %v238
  %v241 = vsub.f32 2.0, %v239
  %v242 = vmul.f32 %v236, %v240
  %v243 = vmul.f32 %v237, %v241
  %v244 = vmul.f32 %v190, %v242
  %v245 = vmul.f32 %v191, %v243
  %v246 = vsel %vm232, 0.0, %v244
  %v247 = vsel %vm233, 0.0, %v245
  %v248 = vsel %vm232, 0.0, 1.0
  %v249 = vsel %vm233, 0.0, 1.0
  %v250 = vmul.f32 %v14, %v102
  %v251 = vmul.f32 %v15, %v103
  %v252 = vmul.f32 %v148, 0.6
  %v253 = vmul.f32 %v149, 0.6
  %v254 = vmul.f32 %v246, 0.4
  %v255 = vmul.f32 %v247, 0.4
  %v256 = vadd.f32 %v252, %v254
  %v257 = vadd.f32 %v253, %v255
  %v258 = vsub.f32 %v248, %v102
  %v259 = vsub.f32 %v249, %v103
  %v260 = vmul.f32 %v256, %v258
  %v261 = vmul.f32 %v257, %v259
  %v262 = vadd.f32 %v250, %v260
  %v263 = vadd.f32 %v251, %v261
  %vm264 = vcmask 1045504
  %v265 = vsel %vm264, %v230, inf
  %v266 = vsel %vm264, %v231, inf
  %v267 = vmin.f32 %v265, %v266
  %268 = vmin.xlane.f32.xlu0 %v267
  %v269 = vpop.xlane.xlu0 %268
  %v270 = vrot.slane %v269, 4
  %v271 = vmin.f32 %v269, %v270
  %v272 = vrot.slane %v271, 2
  %v273 = vmin.f32 %v271, %v272
  %v274 = vrot.slane %v273, 1
  %v275 = vmin.f32 %v273, %v274
  %s276 = vtos %v275
  // While loop
  $region14: #{partial_avg_forward.1} parent=0 // loop_pre_header
    _
  $region15: #{partial_avg_forward.1} parent=0 // loop_header
    %v278 = vphi %v262, %v592
    %v279 = vphi %v263, %v593
    %v280 = vphi %v248, %v580
    %v281 = vphi %v249, %v581
    %s282 = sphi %s276, %s605
    %s283 = sphi 1, %s606
    %p284 = scmp.eq.f32.partialorder %s282, 0.0
    %p285 = scmp.lt.s32.totalorder %s283, 40
    %p286 = pnand %p284, %p285
    %p287 = pneg %p286
  $region16: #{partial_avg_forward.1} parent=0 // loop_header_branch
    %289 = sbr.rel (%p286) target = $region20
  $region17: #{partial_avg_forward.1} parent=0 // loop_body
    %290 = vrot.lane.b32.xlu0 %v278, 112
    %v291 = vpop.permute.xlu0 %290
    %292 = vrot.lane.b32.xlu0 %v279, 112
    %v293 = vpop.permute.xlu0 %292
    %v294 = vsel %vm110, %v291, %v293
    %v295 = vsel %vm110, %v293, %v291
    %v296 = vsel %vm94, %v294, -inf
    %v297 = vsel %vm95, %v295, -inf
    %298 = vrot.lane.b32.xlu0 %v278, 16
    %v299 = vpop.permute.xlu0 %298
    %300 = vrot.lane.b32.xlu0 %v279, 16
    %v301 = vpop.permute.xlu0 %300
    %v302 = vsel %vm119, %v299, %v301
    %v303 = vsel %vm119, %v301, %v299
    %v304 = vsel %vm92, %v303, -inf
    %v305 = vsel %vm93, %v302, -inf
    %v306 = vmax.f32 %v296, %v304
    %v307 = vmax.f32 %v297, %v305
    %v308 = vmax.f32 %v278, %v306
    %v309 = vmax.f32 %v279, %v307
    %310 = vrot.lane.b32.xlu0 %v308, 127
    %v311 = vpop.permute.xlu0 %310
    %312 = vrot.lane.b32.xlu0 %v309, 127
    %v313 = vpop.permute.xlu0 %312
    %v314 = vsel %vm132, %v311, %v313
    %v315 = vsel %vm132, %v313, %v311
    %v316 = vsel %vm98, %v314, -inf
    %v317 = vsel %vm99, %v315, -inf
    %318 = vrot.lane.b32.xlu0 %v308, 1
    %v319 = vpop.permute.xlu0 %318
    %320 = vrot.lane.b32.xlu0 %v309, 1
    %v321 = vpop.permute.xlu0 %320
    %v322 = vsel %vm141, %v319, %v321
    %v323 = vsel %vm141, %v321, %v319
    %v324 = vsel %vm96, %v323, -inf
    %v325 = vsel %vm97, %v322, -inf
    %v326 = vmax.f32 %v316, %v324
    %v327 = vmax.f32 %v317, %v325
    %v328 = vmax.f32 %v308, %v326
    %v329 = vmax.f32 %v309, %v327
    %v330 = vmul.f32 %v278, %v280
    %v331 = vmul.f32 %v279, %v281
    %332 = vrot.lane.b32.xlu0 %v330, 112
    %v333 = vpop.permute.xlu0 %332
    %334 = vrot.lane.b32.xlu0 %v331, 112
    %v335 = vpop.permute.xlu0 %334
    %v336 = vsel %vm110, %v333, %v335
    %v337 = vsel %vm110, %v335, %v333
    %v338 = vmul.f32 %v336, %v51
    %v339 = vmul.f32 %v337, %v55
    %v340 = vadd.f32 %v330, %v338
    %v341 = vadd.f32 %v331, %v339
    %342 = vrot.lane.b32.xlu0 %v330, 16
    %v343 = vpop.permute.xlu0 %342
    %344 = vrot.lane.b32.xlu0 %v331, 16
    %v345 = vpop.permute.xlu0 %344
    %v346 = vsel %vm119, %v343, %v345
    %v347 = vsel %vm119, %v345, %v343
    %v348 = vmul.f32 %v347, %v33
    %v349 = vmul.f32 %v346, %v37
    %v350 = vadd.f32 %v340, %v348
    %v351 = vadd.f32 %v341, %v349
    %352 = vrot.lane.b32.xlu0 %v350, 127
    %v353 = vpop.permute.xlu0 %352
    %354 = vrot.lane.b32.xlu0 %v351, 127
    %v355 = vpop.permute.xlu0 %354
    %v356 = vsel %vm132, %v353, %v355
    %v357 = vsel %vm132, %v355, %v353
    %v358 = vmul.f32 %v356, %v87
    %v359 = vmul.f32 %v357, %v91
    %v360 = vadd.f32 %v350, %v358
    %v361 = vadd.f32 %v351, %v359
    %362 = vrot.lane.b32.xlu0 %v350, 1
    %v363 = vpop.permute.xlu0 %362
    %364 = vrot.lane.b32.xlu0 %v351, 1
    %v365 = vpop.permute.xlu0 %364
    %v366 = vsel %vm141, %v363, %v365
    %v367 = vsel %vm141, %v365, %v363
    %v368 = vmul.f32 %v367, %v69
    %v369 = vmul.f32 %v366, %v73
    %v370 = vadd.f32 %v360, %v368
    %v371 = vadd.f32 %v361, %v369
    %372 = vrot.lane.b32.xlu0 %v280, 112
    %v373 = vpop.permute.xlu0 %372
    %374 = vrot.lane.b32.xlu0 %v281, 112
    %v375 = vpop.permute.xlu0 %374
    %v376 = vsel %vm110, %v373, %v375
    %v377 = vsel %vm110, %v375, %v373
    %v378 = vmul.f32 %v376, %v51
    %v379 = vmul.f32 %v377, %v55
    %v380 = vadd.f32 %v280, %v378
    %v381 = vadd.f32 %v281, %v379
    %382 = vrot.lane.b32.xlu0 %v280, 16
    %v383 = vpop.permute.xlu0 %382
    %384 = vrot.lane.b32.xlu0 %v281, 16
    %v385 = vpop.permute.xlu0 %384
    %v386 = vsel %vm119, %v383, %v385
    %v387 = vsel %vm119, %v385, %v383
    %v388 = vmul.f32 %v387, %v33
    %v389 = vmul.f32 %v386, %v37
    %v390 = vadd.f32 %v380, %v388
    %v391 = vadd.f32 %v381, %v389
    %392 = vrot.lane.b32.xlu0 %v390, 127
    %v393 = vpop.permute.xlu0 %392
    %394 = vrot.lane.b32.xlu0 %v391, 127
    %v395 = vpop.permute.xlu0 %394
    %v396 = vsel %vm132, %v393, %v395
    %v397 = vsel %vm132, %v395, %v393
    %v398 = vmul.f32 %v396, %v87
    %v399 = vmul.f32 %v397, %v91
    %v400 = vadd.f32 %v390, %v398
    %v401 = vadd.f32 %v391, %v399
    %402 = vrot.lane.b32.xlu0 %v390, 1
    %v403 = vpop.permute.xlu0 %402
    %404 = vrot.lane.b32.xlu0 %v391, 1
    %v405 = vpop.permute.xlu0 %404
    %v406 = vsel %vm141, %v403, %v405
    %v407 = vsel %vm141, %v405, %v403
    %v408 = vmul.f32 %v407, %v69
    %v409 = vmul.f32 %v406, %v73
    %v410 = vadd.f32 %v400, %v408
    %v411 = vadd.f32 %v401, %v409
    %vm412 = vcmp.eq.f32.partialorder %v410, 0.0
    %vm413 = vcmp.eq.f32.partialorder %v411, 0.0
    %v414 = vsel %vm412, 1.0, %v410
    %v415 = vsel %vm413, 1.0, %v411
    %v416 = vrcp.pop %v414
    %v417 = vrcp.pop %v415
    %v418 = vmul.f32 %v414, %v416
    %v419 = vmul.f32 %v415, %v417
    %v420 = vsub.f32 2.0, %v418
    %v421 = vsub.f32 2.0, %v419
    %v422 = vmul.f32 %v416, %v420
    %v423 = vmul.f32 %v417, %v421
    %v424 = vmul.f32 %v370, %v422
    %v425 = vmul.f32 %v371, %v423
    %v426 = vsel %vm412, 0.0, %v424
    %v427 = vsel %vm413, 0.0, %v425
    %v428 = vsel %vm412, 0.0, 1.0
    %v429 = vsel %vm413, 0.0, 1.0
    %v430 = vmul.f32 %v328, 0.6
    %v431 = vmul.f32 %v329, 0.6
    %v432 = vmul.f32 %v426, 0.4
    %v433 = vmul.f32 %v427, 0.4
    %v434 = vadd.f32 %v430, %v432
    %v435 = vadd.f32 %v431, %v433
    %v436 = vsub.f32 %v428, %v280
    %v437 = vsub.f32 %v429, %v281
    %v438 = vmul.f32 %v434, %v436
    %v439 = vmul.f32 %v435, %v437
    %v440 = vadd.f32 %v330, %v438
    %v441 = vadd.f32 %v331, %v439
    %442 = vrot.lane.b32.xlu0 %v440, 112
    %v443 = vpop.permute.xlu0 %442
    %444 = vrot.lane.b32.xlu0 %v441, 112
    %v445 = vpop.permute.xlu0 %444
    %v446 = vsel %vm110, %v443, %v445
    %v447 = vsel %vm110, %v445, %v443
    %v448 = vsel %vm94, %v446, -inf
    %v449 = vsel %vm95, %v447, -inf
    %450 = vrot.lane.b32.xlu0 %v440, 16
    %v451 = vpop.permute.xlu0 %450
    %452 = vrot.lane.b32.xlu0 %v441, 16
    %v453 = vpop.permute.xlu0 %452
    %v454 = vsel %vm119, %v451, %v453
    %v455 = vsel %vm119, %v453, %v451
    %v456 = vsel %vm92, %v455, -inf
    %v457 = vsel %vm93, %v454, -inf
    %v458 = vmax.f32 %v448, %v456
    %v459 = vmax.f32 %v449, %v457
    %v460 = vmax.f32 %v440, %v458
    %v461 = vmax.f32 %v441, %v459
    %462 = vrot.lane.b32.xlu0 %v460, 127
    %v463 = vpop.permute.xlu0 %462
    %464 = vrot.lane.b32.xlu0 %v461, 127
    %v465 = vpop.permute.xlu0 %464
    %v466 = vsel %vm132, %v463, %v465
    %v467 = vsel %vm132, %v465, %v463
    %v468 = vsel %vm98, %v466, -inf
    %v469 = vsel %vm99, %v467, -inf
    %470 = vrot.lane.b32.xlu0 %v460, 1
    %v471 = vpop.permute.xlu0 %470
    %472 = vrot.lane.b32.xlu0 %v461, 1
    %v473 = vpop.permute.xlu0 %472
    %v474 = vsel %vm141, %v471, %v473
    %v475 = vsel %vm141, %v473, %v471
    %v476 = vsel %vm96, %v475, -inf
    %v477 = vsel %vm97, %v474, -inf
    %v478 = vmax.f32 %v468, %v476
    %v479 = vmax.f32 %v469, %v477
    %v480 = vmax.f32 %v460, %v478
    %v481 = vmax.f32 %v461, %v479
    %v482 = vmul.f32 %v440, %v428
    %v483 = vmul.f32 %v441, %v429
    %484 = vrot.lane.b32.xlu0 %v482, 112
    %v485 = vpop.permute.xlu0 %484
    %486 = vrot.lane.b32.xlu0 %v483, 112
    %v487 = vpop.permute.xlu0 %486
    %v488 = vsel %vm110, %v485, %v487
    %v489 = vsel %vm110, %v487, %v485
    %v490 = vmul.f32 %v488, %v51
    %v491 = vmul.f32 %v489, %v55
    %v492 = vadd.f32 %v482, %v490
    %v493 = vadd.f32 %v483, %v491
    %494 = vrot.lane.b32.xlu0 %v482, 16
    %v495 = vpop.permute.xlu0 %494
    %496 = vrot.lane.b32.xlu0 %v483, 16
    %v497 = vpop.permute.xlu0 %496
    %v498 = vsel %vm119, %v495, %v497
    %v499 = vsel %vm119, %v497, %v495
    %v500 = vmul.f32 %v499, %v33
    %v501 = vmul.f32 %v498, %v37
    %v502 = vadd.f32 %v492, %v500
    %v503 = vadd.f32 %v493, %v501
    %504 = vrot.lane.b32.xlu0 %v502, 127
    %v505 = vpop.permute.xlu0 %504
    %506 = vrot.lane.b32.xlu0 %v503, 127
    %v507 = vpop.permute.xlu0 %506
    %v508 = vsel %vm132, %v505, %v507
    %v509 = vsel %vm132, %v507, %v505
    %v510 = vmul.f32 %v508, %v87
    %v511 = vmul.f32 %v509, %v91
    %v512 = vadd.f32 %v502, %v510
    %v513 = vadd.f32 %v503, %v511
    %514 = vrot.lane.b32.xlu0 %v502, 1
    %v515 = vpop.permute.xlu0 %514
    %516 = vrot.lane.b32.xlu0 %v503, 1
    %v517 = vpop.permute.xlu0 %516
    %v518 = vsel %vm141, %v515, %v517
    %v519 = vsel %vm141, %v517, %v515
    %v520 = vmul.f32 %v519, %v69
    %v521 = vmul.f32 %v518, %v73
    %v522 = vadd.f32 %v512, %v520
    %v523 = vadd.f32 %v513, %v521
    %524 = vrot.lane.b32.xlu0 %v428, 112
    %v525 = vpop.permute.xlu0 %524
    %526 = vrot.lane.b32.xlu0 %v429, 112
    %v527 = vpop.permute.xlu0 %526
    %v528 = vsel %vm110, %v525, %v527
    %v529 = vsel %vm110, %v527, %v525
    %v530 = vmul.f32 %v528, %v51
    %v531 = vmul.f32 %v529, %v55
    %v532 = vadd.f32 %v428, %v530
    %v533 = vadd.f32 %v429, %v531
    %534 = vrot.lane.b32.xlu0 %v428, 16
    %v535 = vpop.permute.xlu0 %534
    %536 = vrot.lane.b32.xlu0 %v429, 16
    %v537 = vpop.permute.xlu0 %536
    %v538 = vsel %vm119, %v535, %v537
    %v539 = vsel %vm119, %v537, %v535
    %v540 = vmul.f32 %v539, %v33
    %v541 = vmul.f32 %v538, %v37
    %v542 = vadd.f32 %v532, %v540
    %v543 = vadd.f32 %v533, %v541
    %544 = vrot.lane.b32.xlu0 %v542, 127
    %v545 = vpop.permute.xlu0 %544
    %546 = vrot.lane.b32.xlu0 %v543, 127
    %v547 = vpop.permute.xlu0 %546
    %v548 = vsel %vm132, %v545, %v547
    %v549 = vsel %vm132, %v547, %v545
    %v550 = vmul.f32 %v548, %v87
    %v551 = vmul.f32 %v549, %v91
    %v552 = vadd.f32 %v542, %v550
    %v553 = vadd.f32 %v543, %v551
    %554 = vrot.lane.b32.xlu0 %v542, 1
    %v555 = vpop.permute.xlu0 %554
    %556 = vrot.lane.b32.xlu0 %v543, 1
    %v557 = vpop.permute.xlu0 %556
    %v558 = vsel %vm141, %v555, %v557
    %v559 = vsel %vm141, %v557, %v555
    %v560 = vmul.f32 %v559, %v69
    %v561 = vmul.f32 %v558, %v73
    %v562 = vadd.f32 %v552, %v560
    %v563 = vadd.f32 %v553, %v561
    %vm564 = vcmp.eq.f32.partialorder %v562, 0.0
    %vm565 = vcmp.eq.f32.partialorder %v563, 0.0
    %v566 = vsel %vm564, 1.0, %v562
    %v567 = vsel %vm565, 1.0, %v563
    %v568 = vrcp.pop %v566
    %v569 = vrcp.pop %v567
    %v570 = vmul.f32 %v566, %v568
    %v571 = vmul.f32 %v567, %v569
    %v572 = vsub.f32 2.0, %v570
    %v573 = vsub.f32 2.0, %v571
    %v574 = vmul.f32 %v568, %v572
    %v575 = vmul.f32 %v569, %v573
    %v576 = vmul.f32 %v522, %v574
    %v577 = vmul.f32 %v523, %v575
    %v578 = vsel %vm564, 0.0, %v576
    %v579 = vsel %vm565, 0.0, %v577
    %v580 = vsel %vm564, 0.0, 1.0
    %v581 = vsel %vm565, 0.0, 1.0
    %v582 = vmul.f32 %v480, 0.6
    %v583 = vmul.f32 %v481, 0.6
    %v584 = vmul.f32 %v578, 0.4
    %v585 = vmul.f32 %v579, 0.4
    %v586 = vadd.f32 %v582, %v584
    %v587 = vadd.f32 %v583, %v585
    %v588 = vsub.f32 %v580, %v428
    %v589 = vsub.f32 %v581, %v429
    %v590 = vmul.f32 %v586, %v588
    %v591 = vmul.f32 %v587, %v589
    %v592 = vadd.f32 %v482, %v590
    %v593 = vadd.f32 %v483, %v591
    %v594 = vsel %vm264, %v562, inf
    %v595 = vsel %vm264, %v563, inf
    %v596 = vmin.f32 %v594, %v595
    %597 = vmin.xlane.f32.xlu0 %v596
    %v598 = vpop.xlane.xlu0 %597
    %v599 = vrot.slane %v598, 4
    %v600 = vmin.f32 %v598, %v599
    %v601 = vrot.slane %v600, 2
    %v602 = vmin.f32 %v600, %v601
    %v603 = vrot.slane %v602, 1
    %v604 = vmin.f32 %v602, %v603
    %s605 = vtos %v604
    %s606 = sadd.s32 %s283, 2
  $region18: #{partial_avg_forward.1} parent=0 // loop_footer
    _
  $region19: #{partial_avg_forward.1} parent=0 // loop_footer_branch
    %277 = sbr.rel target = $region15
  $region20: #{partial_avg_forward.1} parent=0 // loop_exit
    _
  %607 = vst [vmem:[%s3] sm:$0x3f] %v278
  %608 = vst [vmem:[%s3 + $0x8] sm:$0x3f] %v279
  // Predicated region
  $region21: #{partial_avg_forward.1} parent=0 // pred_check
    _
  $region22: #{partial_avg_forward.1} parent=0 // pred_check_branch
    %610 = sbr.rel (0) target = $region24
  $region23: #{partial_avg_forward.1} parent=0 // pred_region
    _
  $region24: #{partial_avg_forward.1} parent=0 // pred_fallthru
    _
  // Predicated region
  $region25: #{partial_avg_forward.1} parent=0 // pred_check
    _
  $region26: #{partial_avg_forward.1} parent=0 // pred_check_branch
    %612 = sbr.rel (0) target = $region28
  $region27: #{partial_avg_forward.1} parent=0 // pred_region
    _
  $region28: #{partial_avg_forward.1} parent=0 // pred_fallthru
    _

</llo_original>
